<compile_context>
chip_gen: v7x
topology: tpu7x:2x2x1
jax: 0.10.0
libtpu: 0.0.40
codegen_flags: <defaults>
</compile_context>

<pallas_src>
import functools

import jax
import jax.numpy as jnp
from jax.experimental import pallas as pl
from jax.experimental.pallas import tpu as pltpu

_MAX_TILE_P = 32768                     # max pixels per grid step (lane-dense)
_LOGITS_BUF_BUDGET = 6 * 1024 * 1024    # bytes per logits VMEM buffer (x2 for double-buffer)


def _round_down_128(x):
    return max(128, (x // 128) * 128)


def _iou_kernel(C, HW, tile_p, needs_mask,
                cls_ref, x_ref, t_ref, inter_ref, union_ref,
                inter_acc, union_acc):
    # cls_ref : SMEM int32[1]                (scalar prefetch: class id)
    # x_ref   : VMEM logits[1, C, tile_p]    (native dtype)
    # t_ref   : VMEM int32[1, 1, tile_p]
    # inter_ref / union_ref : VMEM f32[1, 1] outputs (resident; written on last step)
    # inter_acc / union_acc : VMEM f32[1, tile_p] per-lane accumulators
    n = pl.program_id(0)
    pi = pl.program_id(1)
    n_last = pl.num_programs(0) - 1
    pi_last = pl.num_programs(1) - 1

    @pl.when((n == 0) & (pi == 0))
    def _():
        inter_acc[...] = jnp.zeros_like(inter_acc)
        union_acc[...] = jnp.zeros_like(union_acc)

    cls = cls_ref[0]

    x = x_ref[0].astype(jnp.float32)        # (C, tile_p); cast hidden under DMA
    t = t_ref[0]                            # (1, tile_p) int32

    # Select the logits row of class `cls` via scalar 0/1 splat multiplies
    # (no dynamic sublane slice, no best-index tracking array).
    x_cls = x[0:1, :] * (cls == 0).astype(jnp.float32)
    for c in range(1, C):
        x_cls = x_cls + x[c:c + 1, :] * (cls == c).astype(jnp.float32)

    # First-occurrence argmax test: row `cls` is torch.argmax(dim=1) iff it is
    # strictly greater than every earlier channel and >= every later channel.
    ok = None
    for c in range(C):
        gt = (x_cls > x[c:c + 1, :]).astype(jnp.int32)
        eq = (x_cls == x[c:c + 1, :]).astype(jnp.int32)
        tie_ok = (cls <= c).astype(jnp.int32)        # scalar 0/1: ties allowed for c >= cls
        ok_c = gt + eq * tie_ok                      # in {0, 1}
        ok = ok_c if ok is None else ok * ok_c
    in_range = jnp.logical_and(cls >= 0, cls < C).astype(jnp.int32)   # scalar 0/1
    seg_idx = (ok * in_range) > 0                    # (1, tile_p) bool
    tgt_idx = t == cls                               # (1, tile_p) bool

    def _accum(seg, tgt):
        inter_acc[...] = inter_acc[...] + (seg & tgt).astype(jnp.float32)
        union_acc[...] = union_acc[...] + (seg | tgt).astype(jnp.float32)

    if needs_mask:
        # Only the statically-known partial last pixel tile needs masking.
        @pl.when(pi == pi_last)
        def _():
            lane = jax.lax.broadcasted_iota(jnp.int32, (1, tile_p), 1)
            valid = (pi * tile_p + lane) < HW
            _accum(seg_idx & valid, tgt_idx & valid)

        @pl.when(pi != pi_last)
        def _():
            _accum(seg_idx, tgt_idx)
    else:
        _accum(seg_idx, tgt_idx)

    # Single cross-lane reduction + (1,1) store on the very last grid step.
    @pl.when((n == n_last) & (pi == pi_last))
    def _():
        inter_ref[...] = jnp.sum(inter_acc[...], keepdims=True)
        union_ref[...] = jnp.sum(union_acc[...], keepdims=True)


@functools.partial(jax.jit, static_argnames=("max_tile_p",))
def iou_score(logits, target, cls, max_tile_p=None):
    """IoU of (argmax over channels of logits == cls) vs (target == cls).

    logits: (N, C, H, W) float (any dtype); target: (N, H, W) int; cls: int.
    Returns float32 scalar (NaN when the union is empty).
    """
    N, C, H, W = logits.shape
    HW = H * W

    # Free reshapes only: no HBM transpose, logits stay in native dtype.
    x = logits.reshape(N, C, HW)
    t = target.reshape(N, 1, HW).astype(jnp.int32)

    itemsize = jnp.dtype(logits.dtype).itemsize
    cap = _MAX_TILE_P if max_tile_p is None else max_tile_p
    cap = min(cap, _LOGITS_BUF_BUDGET // max(1, C * itemsize))
    cap = _round_down_128(cap)
    if HW <= cap:
        tile_p = HW          # whole pixel row per step (equals full dim)
    else:
        tile_p = cap         # multiple of 128; boundary tile handled by mask
    npt = pl.cdiv(HW, tile_p)
    needs_mask = (HW % tile_p) != 0

    cls_arr = jnp.asarray(cls, dtype=jnp.int32).reshape((1,))
    kernel = functools.partial(_iou_kernel, C, HW, tile_p, needs_mask)

    inter, union = pl.pallas_call(
        kernel,
        out_shape=(
            jax.ShapeDtypeStruct((1, 1), jnp.float32),
            jax.ShapeDtypeStruct((1, 1), jnp.float32),
        ),
        grid_spec=pltpu.PrefetchScalarGridSpec(
            num_scalar_prefetch=1,
            grid=(N, npt),
            in_specs=[
                pl.BlockSpec((1, C, tile_p), lambda n, pi, cls_r: (n, 0, pi)),
                pl.BlockSpec((1, 1, tile_p), lambda n, pi, cls_r: (n, 0, pi)),
            ],
            out_specs=[
                pl.BlockSpec((1, 1), lambda n, pi, cls_r: (0, 0)),
                pl.BlockSpec((1, 1), lambda n, pi, cls_r: (0, 0)),
            ],
            scratch_shapes=[
                pltpu.VMEM((1, tile_p), jnp.float32),
                pltpu.VMEM((1, tile_p), jnp.float32),
            ],
        ),
        compiler_params=pltpu.CompilerParams(
            dimension_semantics=("arbitrary", "arbitrary"),
            vmem_limit_bytes=32 * 1024 * 1024,
        ),
    )(cls_arr, x, t)

    inter_s = inter[0, 0]
    union_s = union[0, 0]
    return jnp.where(union_s == 0, jnp.nan, inter_s / union_s)


def _reference_iou(logits, target, cls):
    seg = jnp.argmax(logits, axis=1)
    seg_idx = seg == cls
    tgt_idx = target == cls
    inter = jnp.sum((seg_idx & tgt_idx).astype(jnp.float32))
    union = jnp.sum((seg_idx | tgt_idx).astype(jnp.float32))
    return jnp.where(union == 0, jnp.nan, inter / union)


if __name__ == "__main__":
    key = jax.random.PRNGKey(0)
    k1, k2, k3, k4, k5, k6 = jax.random.split(key, 6)

    # 1) Main case (small shapes consistent with the module).
    N, C, H, W = 2, 4, 16, 16
    logits = jax.random.normal(k1, (N, C, H, W), dtype=jnp.float32)
    target = jax.random.randint(k2, (N, H, W), 0, C, dtype=jnp.int32)
    out = jax.block_until_ready(iou_score(logits, target, 1))
    ref = _reference_iou(logits, target, 1)
    assert jnp.allclose(out, ref, atol=1e-6, equal_nan=True), (out, ref)

    # 2) Empty-union -> NaN path (finite logits; argmax is always channel 0).
    logits2 = jnp.broadcast_to(
        -jnp.arange(C, dtype=jnp.float32)[None, :, None, None], (N, C, H, W))
    target2 = jnp.full((N, H, W), 2, jnp.int32)
    out_nan = jax.block_until_ready(iou_score(logits2, target2, 3))
    assert jnp.isnan(out_nan), out_nan

    # 3) Native bf16 logits (no upcast in the wrapper; cast happens in-kernel).
    Nb, Cb, Hb, Wb = 2, 5, 8, 16
    logits3 = jax.random.normal(k3, (Nb, Cb, Hb, Wb), dtype=jnp.bfloat16)
    target3 = jax.random.randint(k4, (Nb, Hb, Wb), 0, Cb, dtype=jnp.int32)
    out3 = jax.block_until_ready(iou_score(logits3, target3, 2))
    ref3 = _reference_iou(logits3, target3, 2)
    assert jnp.allclose(out3, ref3, atol=1e-6, equal_nan=True), (out3, ref3)

    # 4) Pixel count not a multiple of the tile (exercises the tail mask path).
    Nc, Cc, Hc, Wc = 1, 3, 10, 20   # HW = 200, forced tile of 128 -> partial tile
    logits4 = jax.random.normal(k5, (Nc, Cc, Hc, Wc), dtype=jnp.float32)
    target4 = jax.random.randint(k6, (Nc, Hc, Wc), 0, Cc, dtype=jnp.int32)
    out4 = jax.block_until_ready(iou_score(logits4, target4, 0, max_tile_p=128))
    ref4 = _reference_iou(logits4, target4, 0)
    assert jnp.allclose(out4, ref4, atol=1e-6, equal_nan=True), (out4, ref4)

    print("KERNEL_OK")
</pallas_src>

<mosaic_0001>
module attributes {stable_mosaic.version = 11 : i64} {
  func.func @_iou_kernel(%arg0: i32, %arg1: i32, %arg2: memref<1xi32, #tpu.memory_space<smem>>, %arg3: memref<1x4x256xf32, #tpu.memory_space<vmem>>, %arg4: memref<1x1x256xi32, #tpu.memory_space<vmem>>, %arg5: memref<1x1xf32, #tpu.memory_space<vmem>>, %arg6: memref<1x1xf32, #tpu.memory_space<vmem>>, %arg7: memref<1x256xf32, #tpu.memory_space<vmem>>, %arg8: memref<1x256xf32, #tpu.memory_space<vmem>>) attributes {dimension_semantics = [#tpu.dimension_semantics<arbitrary>, #tpu.dimension_semantics<arbitrary>], iteration_bounds = array<i64: 2, 1>, scalar_prefetch = 1 : i64, scratch_operands = 2 : i64, tpu.core_type = #tpu.core_type<tc>, window_params = [{transform_indices = @transform_0, window_bounds = array<i64: 1, 4, 256>}, {transform_indices = @transform_1, window_bounds = array<i64: 1, 1, 256>}, {pipeline_mode = #tpu.pipeline_mode<synchronous>, transform_indices = @transform_2, window_bounds = array<i64: 1, 1>}, {pipeline_mode = #tpu.pipeline_mode<synchronous>, transform_indices = @transform_3, window_bounds = array<i64: 1, 1>}]} {
    %c0_i32 = arith.constant 0 : i32
    %0 = arith.cmpi eq, %arg0, %c0_i32 : i32
    %c0_i32_0 = arith.constant 0 : i32
    %1 = arith.cmpi eq, %arg1, %c0_i32_0 : i32
    %2 = arith.andi %0, %1 : i1
    %3 = arith.extui %2 : i1 to i32
    %c0_i32_1 = arith.constant 0 : i32
    %4 = arith.cmpi ne, %3, %c0_i32_1 : i32
    scf.if %4 {
      %cst = arith.constant 0.000000e+00 : f32
      %111 = vector.broadcast %cst : f32 to vector<1x256xf32>
      %c0_26 = arith.constant 0 : index
      %c0_27 = arith.constant 0 : index
      %112 = vector.load %arg7[%c0_26, %c0_27] : memref<1x256xf32, #tpu.memory_space<vmem>>, vector<1x256xf32>
      tpu.vector_store %arg7[%c0_26, %c0_27], %111 {strides = array<i32>} : memref<1x256xf32, #tpu.memory_space<vmem>>, vector<1x256xf32>,
      %cst_28 = arith.constant 0.000000e+00 : f32
      %113 = vector.broadcast %cst_28 : f32 to vector<1x256xf32>
      %c0_29 = arith.constant 0 : index
      %c0_30 = arith.constant 0 : index
      %114 = vector.load %arg8[%c0_29, %c0_30] : memref<1x256xf32, #tpu.memory_space<vmem>>, vector<1x256xf32>
      tpu.vector_store %arg8[%c0_29, %c0_30], %113 {strides = array<i32>} : memref<1x256xf32, #tpu.memory_space<vmem>>, vector<1x256xf32>,
    } else {
    }
    %c0 = arith.constant 0 : index
    %5 = memref.load %arg2[%c0] : memref<1xi32, #tpu.memory_space<smem>>
    %c0_2 = arith.constant 0 : index
    %c0_3 = arith.constant 0 : index
    %c0_4 = arith.constant 0 : index
    %6 = vector.load %arg3[%c0_2, %c0_3, %c0_4] : memref<1x4x256xf32, #tpu.memory_space<vmem>>, vector<1x4x256xf32>
    %7 = vector.shape_cast %6 : vector<1x4x256xf32> to vector<4x256xf32>
    %c0_5 = arith.constant 0 : index
    %c0_6 = arith.constant 0 : index
    %c0_7 = arith.constant 0 : index
    %8 = vector.load %arg4[%c0_5, %c0_6, %c0_7] : memref<1x1x256xi32, #tpu.memory_space<vmem>>, vector<1x1x256xi32>
    %9 = vector.shape_cast %8 : vector<1x1x256xi32> to vector<1x256xi32>
    %10 = vector.extract_strided_slice %7 {offsets = [0, 0], sizes = [1, 256], strides = [1, 1]} : vector<4x256xf32> to vector<1x256xf32>
    %c0_i32_8 = arith.constant 0 : i32
    %11 = arith.cmpi eq, %5, %c0_i32_8 : i32
    %12 = arith.extui %11 : i1 to i32
    %13 = arith.sitofp %12 : i32 to f32
    %14 = vector.broadcast %13 : f32 to vector<1x256xf32>
    %15 = arith.mulf %10, %14 : vector<1x256xf32>
    %16 = vector.extract_strided_slice %7 {offsets = [1, 0], sizes = [1, 256], strides = [1, 1]} : vector<4x256xf32> to vector<1x256xf32>
    %c1_i32 = arith.constant 1 : i32
    %17 = arith.cmpi eq, %5, %c1_i32 : i32
    %18 = arith.extui %17 : i1 to i32
    %19 = arith.sitofp %18 : i32 to f32
    %20 = vector.broadcast %19 : f32 to vector<1x256xf32>
    %21 = arith.mulf %16, %20 : vector<1x256xf32>
    %22 = arith.addf %15, %21 : vector<1x256xf32>
    %23 = vector.extract_strided_slice %7 {offsets = [2, 0], sizes = [1, 256], strides = [1, 1]} : vector<4x256xf32> to vector<1x256xf32>
    %c2_i32 = arith.constant 2 : i32
    %24 = arith.cmpi eq, %5, %c2_i32 : i32
    %25 = arith.extui %24 : i1 to i32
    %26 = arith.sitofp %25 : i32 to f32
    %27 = vector.broadcast %26 : f32 to vector<1x256xf32>
    %28 = arith.mulf %23, %27 : vector<1x256xf32>
    %29 = arith.addf %22, %28 : vector<1x256xf32>
    %30 = vector.extract_strided_slice %7 {offsets = [3, 0], sizes = [1, 256], strides = [1, 1]} : vector<4x256xf32> to vector<1x256xf32>
    %c3_i32 = arith.constant 3 : i32
    %31 = arith.cmpi eq, %5, %c3_i32 : i32
    %32 = arith.extui %31 : i1 to i32
    %33 = arith.sitofp %32 : i32 to f32
    %34 = vector.broadcast %33 : f32 to vector<1x256xf32>
    %35 = arith.mulf %30, %34 : vector<1x256xf32>
    %36 = arith.addf %29, %35 : vector<1x256xf32>
    %37 = vector.extract_strided_slice %7 {offsets = [0, 0], sizes = [1, 256], strides = [1, 1]} : vector<4x256xf32> to vector<1x256xf32>
    %38 = arith.cmpf ogt, %36, %37 : vector<1x256xf32>
    %39 = arith.extui %38 : vector<1x256xi1> to vector<1x256xi32>
    %40 = vector.extract_strided_slice %7 {offsets = [0, 0], sizes = [1, 256], strides = [1, 1]} : vector<4x256xf32> to vector<1x256xf32>
    %41 = arith.cmpf oeq, %36, %40 : vector<1x256xf32>
    %42 = arith.extui %41 : vector<1x256xi1> to vector<1x256xi32>
    %c0_i32_9 = arith.constant 0 : i32
    %43 = arith.cmpi sle, %5, %c0_i32_9 : i32
    %44 = arith.extui %43 : i1 to i32
    %45 = vector.broadcast %44 : i32 to vector<1x256xi32>
    %46 = arith.muli %42, %45 : vector<1x256xi32>
    %47 = arith.addi %39, %46 : vector<1x256xi32>
    %48 = vector.extract_strided_slice %7 {offsets = [1, 0], sizes = [1, 256], strides = [1, 1]} : vector<4x256xf32> to vector<1x256xf32>
    %49 = arith.cmpf ogt, %36, %48 : vector<1x256xf32>
    %50 = arith.extui %49 : vector<1x256xi1> to vector<1x256xi32>
    %51 = vector.extract_strided_slice %7 {offsets = [1, 0], sizes = [1, 256], strides = [1, 1]} : vector<4x256xf32> to vector<1x256xf32>
    %52 = arith.cmpf oeq, %36, %51 : vector<1x256xf32>
    %53 = arith.extui %52 : vector<1x256xi1> to vector<1x256xi32>
    %c1_i32_10 = arith.constant 1 : i32
    %54 = arith.cmpi sle, %5, %c1_i32_10 : i32
    %55 = arith.extui %54 : i1 to i32
    %56 = vector.broadcast %55 : i32 to vector<1x256xi32>
    %57 = arith.muli %53, %56 : vector<1x256xi32>
    %58 = arith.addi %50, %57 : vector<1x256xi32>
    %59 = arith.muli %47, %58 : vector<1x256xi32>
    %60 = vector.extract_strided_slice %7 {offsets = [2, 0], sizes = [1, 256], strides = [1, 1]} : vector<4x256xf32> to vector<1x256xf32>
    %61 = arith.cmpf ogt, %36, %60 : vector<1x256xf32>
    %62 = arith.extui %61 : vector<1x256xi1> to vector<1x256xi32>
    %63 = vector.extract_strided_slice %7 {offsets = [2, 0], sizes = [1, 256], strides = [1, 1]} : vector<4x256xf32> to vector<1x256xf32>
    %64 = arith.cmpf oeq, %36, %63 : vector<1x256xf32>
    %65 = arith.extui %64 : vector<1x256xi1> to vector<1x256xi32>
    %c2_i32_11 = arith.constant 2 : i32
    %66 = arith.cmpi sle, %5, %c2_i32_11 : i32
    %67 = arith.extui %66 : i1 to i32
    %68 = vector.broadcast %67 : i32 to vector<1x256xi32>
    %69 = arith.muli %65, %68 : vector<1x256xi32>
    %70 = arith.addi %62, %69 : vector<1x256xi32>
    %71 = arith.muli %59, %70 : vector<1x256xi32>
    %72 = vector.extract_strided_slice %7 {offsets = [3, 0], sizes = [1, 256], strides = [1, 1]} : vector<4x256xf32> to vector<1x256xf32>
    %73 = arith.cmpf ogt, %36, %72 : vector<1x256xf32>
    %74 = arith.extui %73 : vector<1x256xi1> to vector<1x256xi32>
    %75 = vector.extract_strided_slice %7 {offsets = [3, 0], sizes = [1, 256], strides = [1, 1]} : vector<4x256xf32> to vector<1x256xf32>
    %76 = arith.cmpf oeq, %36, %75 : vector<1x256xf32>
    %77 = arith.extui %76 : vector<1x256xi1> to vector<1x256xi32>
    %c3_i32_12 = arith.constant 3 : i32
    %78 = arith.cmpi sle, %5, %c3_i32_12 : i32
    %79 = arith.extui %78 : i1 to i32
    %80 = vector.broadcast %79 : i32 to vector<1x256xi32>
    %81 = arith.muli %77, %80 : vector<1x256xi32>
    %82 = arith.addi %74, %81 : vector<1x256xi32>
    %83 = arith.muli %71, %82 : vector<1x256xi32>
    %c0_i32_13 = arith.constant 0 : i32
    %84 = arith.cmpi sge, %5, %c0_i32_13 : i32
    %c4_i32 = arith.constant 4 : i32
    %85 = arith.cmpi slt, %5, %c4_i32 : i32
    %86 = arith.andi %84, %85 : i1
    %87 = arith.extui %86 : i1 to i32
    %88 = vector.broadcast %87 : i32 to vector<1x256xi32>
    %89 = arith.muli %83, %88 : vector<1x256xi32>
    %c0_i32_14 = arith.constant 0 : i32
    %90 = vector.broadcast %c0_i32_14 : i32 to vector<1x256xi32>
    %91 = arith.cmpi sgt, %89, %90 : vector<1x256xi32>
    %92 = vector.broadcast %5 : i32 to vector<1x256xi32>
    %93 = arith.cmpi eq, %9, %92 : vector<1x256xi32>
    %c0_15 = arith.constant 0 : index
    %c0_16 = arith.constant 0 : index
    %94 = vector.load %arg7[%c0_15, %c0_16] : memref<1x256xf32, #tpu.memory_space<vmem>>, vector<1x256xf32>
    %95 = arith.andi %91, %93 : vector<1x256xi1>
    %96 = arith.extui %95 : vector<1x256xi1> to vector<1x256xi32>
    %97 = arith.sitofp %96 : vector<1x256xi32> to vector<1x256xf32>
    %98 = arith.addf %94, %97 : vector<1x256xf32>
    %c0_17 = arith.constant 0 : index
    %c0_18 = arith.constant 0 : index
    %99 = vector.load %arg7[%c0_17, %c0_18] : memref<1x256xf32, #tpu.memory_space<vmem>>, vector<1x256xf32>
    tpu.vector_store %arg7[%c0_17, %c0_18], %98 {strides = array<i32>} : memref<1x256xf32, #tpu.memory_space<vmem>>, vector<1x256xf32>,
    %c0_19 = arith.constant 0 : index
    %c0_20 = arith.constant 0 : index
    %100 = vector.load %arg8[%c0_19, %c0_20] : memref<1x256xf32, #tpu.memory_space<vmem>>, vector<1x256xf32>
    %101 = arith.ori %91, %93 : vector<1x256xi1>
    %102 = arith.extui %101 : vector<1x256xi1> to vector<1x256xi32>
    %103 = arith.sitofp %102 : vector<1x256xi32> to vector<1x256xf32>
    %104 = arith.addf %100, %103 : vector<1x256xf32>
    %c0_21 = arith.constant 0 : index
    %c0_22 = arith.constant 0 : index
    %105 = vector.load %arg8[%c0_21, %c0_22] : memref<1x256xf32, #tpu.memory_space<vmem>>, vector<1x256xf32>
    tpu.vector_store %arg8[%c0_21, %c0_22], %104 {strides = array<i32>} : memref<1x256xf32, #tpu.memory_space<vmem>>, vector<1x256xf32>,
    %c1_i32_23 = arith.constant 1 : i32
    %106 = arith.cmpi eq, %arg0, %c1_i32_23 : i32
    %c0_i32_24 = arith.constant 0 : i32
    %107 = arith.cmpi eq, %arg1, %c0_i32_24 : i32
    %108 = arith.andi %106, %107 : i1
    %109 = arith.extui %108 : i1 to i32
    %c0_i32_25 = arith.constant 0 : i32
    %110 = arith.cmpi ne, %109, %c0_i32_25 : i32
    scf.if %110 {
      %c0_26 = arith.constant 0 : index
      %c0_27 = arith.constant 0 : index
      %111 = vector.load %arg7[%c0_26, %c0_27] : memref<1x256xf32, #tpu.memory_space<vmem>>, vector<1x256xf32>
      %112 = vector.shape_cast %111 : vector<1x256xf32> to vector<1x1x256xf32>
      %cst = arith.constant dense<0.000000e+00> : vector<1xf32>
      %113 = vector.multi_reduction <add>, %112, %cst [1, 2] : vector<1x1x256xf32> to vector<1xf32>
      %114 = vector.shape_cast %113 : vector<1xf32> to vector<1x1x1xf32>
      %115 = vector.extract %114[0, 0, 0] : f32 from vector<1x1x1xf32>
      %116 = vector.broadcast %115 : f32 to vector<1x1xf32>
      %c0_28 = arith.constant 0 : index
      %c0_29 = arith.constant 0 : index
      %117 = vector.load %arg5[%c0_28, %c0_29] : memref<1x1xf32, #tpu.memory_space<vmem>>, vector<1x1xf32>
      tpu.vector_store %arg5[%c0_28, %c0_29], %116 {strides = array<i32>} : memref<1x1xf32, #tpu.memory_space<vmem>>, vector<1x1xf32>,
      %c0_30 = arith.constant 0 : index
      %c0_31 = arith.constant 0 : index
      %118 = vector.load %arg8[%c0_30, %c0_31] : memref<1x256xf32, #tpu.memory_space<vmem>>, vector<1x256xf32>
      %119 = vector.shape_cast %118 : vector<1x256xf32> to vector<1x1x256xf32>
      %cst_32 = arith.constant dense<0.000000e+00> : vector<1xf32>
      %120 = vector.multi_reduction <add>, %119, %cst_32 [1, 2] : vector<1x1x256xf32> to vector<1xf32>
      %121 = vector.shape_cast %120 : vector<1xf32> to vector<1x1x1xf32>
      %122 = vector.extract %121[0, 0, 0] : f32 from vector<1x1x1xf32>
      %123 = vector.broadcast %122 : f32 to vector<1x1xf32>
      %c0_33 = arith.constant 0 : index
      %c0_34 = arith.constant 0 : index
      %124 = vector.load %arg6[%c0_33, %c0_34] : memref<1x1xf32, #tpu.memory_space<vmem>>, vector<1x1xf32>
      tpu.vector_store %arg6[%c0_33, %c0_34], %123 {strides = array<i32>} : memref<1x1xf32, #tpu.memory_space<vmem>>, vector<1x1xf32>,
    } else {
    }
    return
  }
  func.func @transform_0(%arg0: i32, %arg1: i32, %arg2: memref<1xi32, #tpu.memory_space<smem>>) -> (i32, i32, i32) {
    %c0_i32 = arith.constant 0 : i32
    %c0_i32_0 = arith.constant 0 : i32
    return %arg0, %c0_i32, %arg1 : i32, i32, i32
  }
  func.func @transform_1(%arg0: i32, %arg1: i32, %arg2: memref<1xi32, #tpu.memory_space<smem>>) -> (i32, i32, i32) {
    %c0_i32 = arith.constant 0 : i32
    %c0_i32_0 = arith.constant 0 : i32
    return %arg0, %c0_i32, %arg1 : i32, i32, i32
  }
  func.func @transform_2(%arg0: i32, %arg1: i32, %arg2: memref<1xi32, #tpu.memory_space<smem>>) -> (i32, i32) {
    %c0_i32 = arith.constant 0 : i32
    %c0_i32_0 = arith.constant 0 : i32
    %c0_i32_1 = arith.constant 0 : i32
    return %c0_i32, %c0_i32_0 : i32, i32
  }
  func.func @transform_3(%arg0: i32, %arg1: i32, %arg2: memref<1xi32, #tpu.memory_space<smem>>) -> (i32, i32) {
    %c0_i32 = arith.constant 0 : i32
    %c0_i32_0 = arith.constant 0 : i32
    %c0_i32_1 = arith.constant 0 : i32
    return %c0_i32, %c0_i32_0 : i32, i32
  }
}

</mosaic_0001>

<llo_original>
// kernel: iou_score.1
$region0: #{iou_score.1}
  #allocation0 [shape = 'u32[]', space=smem, size = 0x4, offset = 0x4, fixed_abs, tag = 'smem constant byte address 0x4 - core index']
  #allocation1 [shape = 'u32[144,128]{1,0:T(1,128)}', space=vmem, size = 0x12000, scoped, tag = 'internal scratch']
  #allocation2 [shape = 'f32[1,256]{1,0:T(1,128)}', space=vmem, size = 0x400, scoped, tag = 'scratch operand']
  #allocation3 [shape = 'f32[1,256]{1,0:T(1,128)}', space=vmem, size = 0x400, scoped, tag = 'scratch operand']
  #allocation4 [shape = 's32[1]{0}', space=sflag, size = 0x4, scoped, tag = 'scoped memory for iou_score.1']
  #allocation5 [shape = 's32[1]{0:T(128)S(6)}', space=smem, size = 0x200, scoped, tag = 'prefetched SMEM operand 0']
  %s0 = inlined_call_operand.<no memory space> [shape: s32[1], index: 0, kind: input, shape index: {}]
  %s1 = inlined_call_operand.vmem [shape: f32[2,4,256], index: 1, kind: input, shape index: {}]
  %s2 = inlined_call_operand.vmem [shape: s32[2,1,256], index: 2, kind: input, shape index: {}]
  %s3 = inlined_call_operand.hbm [shape: f32[1,1], index: 3, kind: output, shape index: {0}]
  %s4 = inlined_call_operand.hbm [shape: f32[1,1], index: 4, kind: output, shape index: {1}]
  %5 = xla_tuple %s3, %s4
  %s6 = sld [smem:[#allocation0]]
  $region57: #{iou_score.1} parent=0
    _
  %s8 = ssub.s32 1, %s6
  %s9 = scalar_select 0, %s8, %s6
  %10 = sst [smem:[#allocation5]] %s0
  $region1: #{iou_score.1} parent=0
    #allocation6 [shape = 'u8[512]{0}', space=vmem, size = 0x400, scoped, tag = 'output window, operand 0, single buffered']
    #allocation7 [shape = 's32[2]{0}', space=sflag, size = 0x8, scoped, tag = 'scoped memory for iou_score.1']
    #allocation8 [shape = 'u8[512]{0}', space=vmem, size = 0x400, scoped, tag = 'output window, operand 1, single buffered']
    #allocation9 [shape = 's32[1]{0}', space=sflag, size = 0x4, scoped, tag = 'scoped memory for iou_score.1']
    %11 = vsyncpa [#allocation7], 0
    %12 = vsyncpa [#allocation9], 0
    loop: start=0, step=1, limit=4
    $region2: #{iou_score.1} parent=1 // loop_pre_header
      _
    $region3: #{iou_score.1} parent=1 // loop_header
      %s14 = sphi 0, %s18
      %p15 = scmp.ge.s32.totalorder %s14, 4
      %s21 = sphi 0, %s33
      %s22 = sphi 0, %s29
      %s23 = sphi 0, %s21
      %s24 = sphi 0, %s22
      %s25 = sphi 0, %s23
      %s26 = sphi 0, %s24
      %s38 = sphi 0, %s40
      %s41 = sphi 0, %s38
      %s42 = sphi 0, %s41
      %s58 = sphi 0, %s42
      %s66 = sphi 0, %s68
      %s69 = sphi 0, %s66
      %s70 = sphi 0, %s69
      %s86 = sphi 0, %s70
      %s90 = sphi 0, %s90
      %s92 = sphi 0, %s90
      %s93 = sphi 0, %s92
      %s107 = sphi 0, %s93
      %s111 = sphi 0, %s111
      %s113 = sphi 0, %s111
      %s114 = sphi 0, %s113
      %s128 = sphi 0, %s114
    $region4: #{iou_score.1} parent=1 // loop_header_branch
      %17 = sbr.rel (%p15) target = $region8
    $region5: #{iou_score.1} parent=1 // loop_body
      %s19 = ssub.s32 %s14, 1
      %s20 = ssub.s32 %s14, 2
      %s27 = sadd.s32 1, %s22
      %p28 = scmp.ge.s32.totalorder %s27, 1
      %s29 = scalar_select %p28, 0, %s27
      %s30 = sadd.s32 1, %s21
      %s31 = scalar_select %p28, %s30, %s21
      %p32 = scmp.ge.s32.totalorder %s31, 2
      %s33 = scalar_select %p32, 0, %s31
      %s34 = ssub.s32 %s21, %s33
      %s35 = ssub.s32 %s22, %s29
      %s36 = sor.u32 %s34, %s35
      %p37 = scmp.eq.s32.totalorder %s36, 0
      %s39 = sadd.s32 %s38, 1
      %s40 = scalar_select %p37, %s38, %s39
      %p43 = pneg %p37
      %p44 = scmp.eq.s32.totalorder %s14, 1
      %p45 = por %p43, %p44
      %p46 = scmp.ne.s32.totalorder %s38, %s41
      %p47 = scmp.eq.s32.totalorder %s14, 0
      %p48 = por %p46, %p47
      %p49 = scmp.ne.s32.totalorder %s38, %s41
      %p50 = scmp.eq.s32.totalorder %s19, 1
      %p51 = por %p49, %p50
      %p52 = scmp.ne.s32.totalorder %s41, %s42
      %p53 = scmp.eq.s32.totalorder %s19, 0
      %p54 = por %p52, %p53
      %p55 = scmp.ne.s32.totalorder %s41, %s42
      %p56 = scmp.eq.s32.totalorder %s20, 1
      %p57 = por %p55, %p56
      %p59 = scmp.ne.s32.totalorder %s42, %s58
      %p60 = scmp.eq.s32.totalorder %s20, 0
      %p61 = por %p59, %p60
      %s62 = ssub.s32 %s21, %s33
      %s63 = ssub.s32 %s22, %s29
      %s64 = sor.u32 %s62, %s63
      %p65 = scmp.eq.s32.totalorder %s64, 0
      %s67 = sadd.s32 %s66, 1
      %s68 = scalar_select %p65, %s66, %s67
      %p71 = pneg %p65
      %p72 = scmp.eq.s32.totalorder %s14, 1
      %p73 = por %p71, %p72
      %p74 = scmp.ne.s32.totalorder %s66, %s69
      %p75 = scmp.eq.s32.totalorder %s14, 0
      %p76 = por %p74, %p75
      %p77 = scmp.ne.s32.totalorder %s66, %s69
      %p78 = scmp.eq.s32.totalorder %s19, 1
      %p79 = por %p77, %p78
      %p80 = scmp.ne.s32.totalorder %s69, %s70
      %p81 = scmp.eq.s32.totalorder %s19, 0
      %p82 = por %p80, %p81
      %p83 = scmp.ne.s32.totalorder %s69, %s70
      %p84 = scmp.eq.s32.totalorder %s20, 1
      %p85 = por %p83, %p84
      %p87 = scmp.ne.s32.totalorder %s70, %s86
      %p88 = scmp.eq.s32.totalorder %s20, 0
      %p89 = por %p87, %p88
      %s91 = sadd.s32 %s90, 1
      %p94 = scmp.eq.s32.totalorder %s14, 1
      %p95 = scmp.ne.s32.totalorder %s90, %s92
      %p96 = scmp.eq.s32.totalorder %s14, 0
      %p97 = por %p95, %p96
      %p98 = scmp.ne.s32.totalorder %s90, %s92
      %p99 = scmp.eq.s32.totalorder %s19, 1
      %p100 = por %p98, %p99
      %p101 = scmp.ne.s32.totalorder %s92, %s93
      %p102 = scmp.eq.s32.totalorder %s19, 0
      %p103 = por %p101, %p102
      %p104 = scmp.ne.s32.totalorder %s92, %s93
      %p105 = scmp.eq.s32.totalorder %s20, 1
      %p106 = por %p104, %p105
      %p108 = scmp.ne.s32.totalorder %s93, %s107
      %p109 = scmp.eq.s32.totalorder %s20, 0
      %p110 = por %p108, %p109
      %s112 = sadd.s32 %s111, 1
      %p115 = scmp.eq.s32.totalorder %s14, 1
      %p116 = scmp.ne.s32.totalorder %s111, %s113
      %p117 = scmp.eq.s32.totalorder %s14, 0
      %p118 = por %p116, %p117
      %p119 = scmp.ne.s32.totalorder %s111, %s113
      %p120 = scmp.eq.s32.totalorder %s19, 1
      %p121 = por %p119, %p120
      %p122 = scmp.ne.s32.totalorder %s113, %s114
      %p123 = scmp.eq.s32.totalorder %s19, 0
      %p124 = por %p122, %p123
      %p125 = scmp.ne.s32.totalorder %s113, %s114
      %p126 = scmp.eq.s32.totalorder %s20, 1
      %p127 = por %p125, %p126
      %p129 = scmp.ne.s32.totalorder %s114, %s128
      %p130 = scmp.eq.s32.totalorder %s20, 0
      %p131 = por %p129, %p130
      %p132 = scmp.le.s32.totalorder 1, %s14
      %p133 = scmp.lt.s32.totalorder %s14, 3
      %p134 = pnand %p132, %p133
      %p135 = pneg %p134
      // Predicated region
      $region9: #{iou_score.1} parent=5 // pred_check
        _
      $region10: #{iou_score.1} parent=5 // pred_check_branch
        %137 = sbr.rel (%p134) target = $region12
      $region11: #{iou_score.1} parent=5 // pred_region
        %s138 = ssub.s32 %s14, 1
      $region12: #{iou_score.1} parent=5 // pred_fallthru
        _
      %p139 = scmp.lt.s32.totalorder %s14, 2
      // Predicated region
      $region13: #{iou_score.1} parent=5 // pred_check
        %p140 = pneg %p139
      $region14: #{iou_score.1} parent=5 // pred_check_branch
        %142 = sbr.rel (%p140) target = $region16
      $region15: #{iou_score.1} parent=5 // pred_region
        // Predicated region
        $region17: #{iou_score.1} parent=15 // pred_check
          %p143 = pneg %p48
        $region18: #{iou_score.1} parent=15 // pred_check_branch
          %145 = sbr.rel (%p143) target = $region20
        $region19: #{iou_score.1} parent=15 // pred_region
          %s146 = smul.u32 2, %s22
          %p147 = scmp.lt.s32.totalorder %s21, 1
          %s148 = scalar_select %p147, %s21, 1
          %p149 = scmp.lt.s32.totalorder %s146, 1
          %s150 = scalar_select %p149, %s146, 1
          %s151 = smul.addr %s148, 2
          %s152 = sadd.s32 %s150, %s151
          %s153 = smul.addr %s152, 4
          %s154 = scalar_lea.vmem %s1, %s153
          %s155 = smul.u32 2, %s22
        $region20: #{iou_score.1} parent=15 // pred_fallthru
          _
        // Predicated region
        $region21: #{iou_score.1} parent=15 // pred_check
          %p156 = pneg %p76
        $region22: #{iou_score.1} parent=15 // pred_check_branch
          %158 = sbr.rel (%p156) target = $region24
        $region23: #{iou_score.1} parent=15 // pred_region
          %s159 = smul.u32 2, %s22
          %p160 = scmp.lt.s32.totalorder %s21, 1
          %s161 = scalar_select %p160, %s21, 1
          %p162 = scmp.lt.s32.totalorder %s159, 1
          %s163 = scalar_select %p162, %s159, 1
          %s164 = smul.addr %s161, 2
          %s165 = sadd.s32 %s163, %s164
          %s166 = scalar_lea.vmem %s2, %s165
          %s167 = smul.u32 2, %s22
        $region24: #{iou_score.1} parent=15 // pred_fallthru
          _
      $region16: #{iou_score.1} parent=5 // pred_fallthru
        _
      %p168 = scmp.le.s32.totalorder 1, %s14
      %p169 = scmp.lt.s32.totalorder %s14, 3
      %p170 = pnand %p168, %p169
      %p171 = pneg %p170
      // Predicated region
      $region25: #{iou_score.1} parent=5 // pred_check
        _
      $region26: #{iou_score.1} parent=5 // pred_check_branch
        %173 = sbr.rel (%p170) target = $region28
      $region27: #{iou_score.1} parent=5 // pred_region
        %s174 = ssub.s32 %s14, 1
        %s175 = smul.u32 2, %s24
        %p176 = scmp.lt.s32.totalorder %s23, 1
        %s177 = scalar_select %p176, %s23, 1
        %p178 = scmp.lt.s32.totalorder %s175, 1
        %s179 = scalar_select %p178, %s175, 1
        %s180 = smul.addr %s177, 2
        %s181 = sadd.s32 %s179, %s180
        %s182 = smul.addr %s181, 4
        %s183 = scalar_lea.vmem %s1, %s182
        %p184 = pneg %p54
        %p185 = pneg %p51
        %s186 = smul.u32 2, %s24
        %p187 = scmp.lt.s32.totalorder %s23, 1
        %s188 = scalar_select %p187, %s23, 1
        %p189 = scmp.lt.s32.totalorder %s186, 1
        %s190 = scalar_select %p189, %s186, 1
        %s191 = smul.addr %s188, 2
        %s192 = sadd.s32 %s190, %s191
        %s193 = scalar_lea.vmem %s2, %s192
        %p194 = pneg %p82
        %p195 = pneg %p79
        %p196 = pneg %p103
        %p197 = pneg %p100
        %p198 = pneg %p124
        %p199 = pneg %p121
        %s200 = smul.u32 2, %s24
        %p201 = scmp.lt.s32.totalorder %s23, 1
        %s202 = scalar_select %p201, %s23, 1
        %p203 = scmp.lt.s32.totalorder %s200, 1
        %s204 = scalar_select %p203, %s200, 1
        %s205 = smul.addr %s202, 2
        %s206 = sadd.s32 %s204, %s205
        %s207 = smul.addr %s206, 4
        %s208 = scalar_lea.vmem %s1, %s207
        %s209 = smul.u32 2, %s24
        %s210 = smul.u32 2, %s24
        %p211 = scmp.lt.s32.totalorder %s23, 1
        %s212 = scalar_select %p211, %s23, 1
        %p213 = scmp.lt.s32.totalorder %s210, 1
        %s214 = scalar_select %p213, %s210, 1
        %s215 = smul.addr %s212, 2
        %s216 = sadd.s32 %s214, %s215
        %s217 = scalar_lea.vmem %s2, %s216
        %s218 = smul.u32 2, %s24
        %p219 = scmp.eq.s32.totalorder %s23, 0
        %p220 = scmp.eq.s32.totalorder %s24, 0
        %p221 = pnand %p219, %p220
        %p222 = pneg %p221
        // Predicated region
        $region29: #{iou_score.1} parent=27 // pred_check
          _
        $region30: #{iou_score.1} parent=27 // pred_check_branch
          %224 = sbr.rel (%p221) target = $region32
        $region31: #{iou_score.1} parent=27 // pred_region
          %v225 = vlaneseq
          %vm226 = vcmp.ge.s32.totalorder %v225, 0
          %vm227 = vcmp.lt.s32.totalorder %v225, 256
          %vm228 = vmand %vm226, %vm227
          %229 = vst.msk [vmem:[#allocation2] sm:$0x3] %vm228, 0.0
          %230 = vst.msk [vmem:[#allocation3] sm:$0x3] %vm228, 0.0
        $region32: #{iou_score.1} parent=27 // pred_fallthru
          _
        %s231 = sld [smem:[#allocation5]]
        %v232 = vld [vmem:[%s208] sm:$0xff]
        %v233 = vld [vmem:[%s217] sm:$0x3]
        %p234 = scmp.eq.s32.totalorder %s231, 0
        %s235 = scalar_select %p234, 1, 0
        %s236 = scvt.s32.f32 %s235
        %v237 = vstv %s236
        %v238 = vmul.f32 %v232, %v237
        %p239 = scmp.eq.s32.totalorder %s231, 1
        %s240 = scalar_select %p239, 1, 0
        %s241 = scvt.s32.f32 %s240
        %v242 = vstv %s241
        %v243 = vmul.f32 %v232, %v242
        %v245 = vrot.slane %v243, 5
        %v246 = vrot.slane %v245, 4
        %v248 = vadd.f32 %v238, %v246
        %p249 = scmp.eq.s32.totalorder %s231, 2
        %s250 = scalar_select %p249, 1, 0
        %s251 = scvt.s32.f32 %s250
        %v252 = vstv %s251
        %v253 = vmul.f32 %v232, %v252
        %v255 = vrot.slane %v253, 6
        %v256 = vrot.slane %v255, 4
        %v258 = vadd.f32 %v248, %v256
        %p259 = scmp.eq.s32.totalorder %s231, 3
        %s260 = scalar_select %p259, 1, 0
        %s261 = scvt.s32.f32 %s260
        %v262 = vstv %s261
        %v263 = vmul.f32 %v232, %v262
        %v265 = vrot.slane %v263, 7
        %v266 = vrot.slane %v265, 4
        %v268 = vadd.f32 %v258, %v266
        %vm269 = vcmp.gt.f32.partialorder %v268, %v232
        %v270 = vsel %vm269, 1, 0
        %vm271 = vcmp.eq.f32.partialorder %v268, %v232
        %v272 = vsel %vm271, 1, 0
        %p273 = scmp.le.s32.totalorder %s231, 0
        %s274 = scalar_select %p273, 1, 0
        %v275 = vstv %s274
        %v276 = vmul.u32 %v272, %v275
        %v277 = vadd.s32 %v270, %v276
        %v279 = vrot.slane %v232, 5
        %v280 = vrot.slane %v279, 4
        %vm282 = vcmp.gt.f32.partialorder %v268, %v280
        %v283 = vsel %vm282, 1, 0
        %vm284 = vcmp.eq.f32.partialorder %v268, %v280
        %v285 = vsel %vm284, 1, 0
        %p286 = scmp.le.s32.totalorder %s231, 1
        %s287 = scalar_select %p286, 1, 0
        %v288 = vstv %s287
        %v289 = vmul.u32 %v285, %v288
        %v290 = vadd.s32 %v283, %v289
        %v291 = vmul.u32 %v277, %v290
        %v292 = vrot.slane %v232, 6
        %v293 = vrot.slane %v292, 4
        %vm295 = vcmp.gt.f32.partialorder %v268, %v293
        %v296 = vsel %vm295, 1, 0
        %vm297 = vcmp.eq.f32.partialorder %v268, %v293
        %v298 = vsel %vm297, 1, 0
        %p299 = scmp.le.s32.totalorder %s231, 2
        %s300 = scalar_select %p299, 1, 0
        %v301 = vstv %s300
        %v302 = vmul.u32 %v298, %v301
        %v303 = vadd.s32 %v296, %v302
        %v304 = vmul.u32 %v291, %v303
        %v305 = vrot.slane %v232, 7
        %v306 = vrot.slane %v305, 4
        %vm308 = vcmp.gt.f32.partialorder %v268, %v306
        %v309 = vsel %vm308, 1, 0
        %vm310 = vcmp.eq.f32.partialorder %v268, %v306
        %v311 = vsel %vm310, 1, 0
        %p312 = scmp.le.s32.totalorder %s231, 3
        %s313 = scalar_select %p312, 1, 0
        %v314 = vstv %s313
        %v315 = vmul.u32 %v311, %v314
        %v316 = vadd.s32 %v309, %v315
        %v317 = vmul.u32 %v304, %v316
        %p318 = scmp.ge.s32.totalorder %s231, 0
        %p319 = scmp.lt.s32.totalorder %s231, 4
        %p320 = pnand %p318, %p319
        %p321 = pneg %p320
        %s322 = scalar_select %p321, 1, 0
        %v323 = vstv %s322
        %v324 = vmul.u32 %v317, %v323
        %vm325 = vcmp.gt.s32.totalorder %v324, 0
        %v326 = vstv %s231
        %vm327 = vcmp.eq.s32.totalorder %v233, %v326
        %v328 = vld [vmem:[#allocation2] sm:$0x3]
        %v329 = vsel %vm327, 1, 0
        %v331 = vunpack.c.l.s4 286326784
        %v332 = vunpack.c.0.s8 %v331
        %v333 = vlaneseq
        %v334 = vshrl.u32 %v333, 7
        %v335 = vsub.s32 %v332, %v334
        %v336 = vrot.slane %v329, %v335
        %vm337 = vcmp.ne.s32.totalorder %v336, 0
        %vm338 = vmand %vm325, %vm337
        %v339 = vsel %vm338, 1, 0
        %v340 = vcvt.s32.f32 %v339
        %v343 = vunpack.c.l.s4 1966171168
        %v344 = vunpack.c.0.s8 %v343
        %v345 = vlaneseq
        %v346 = vshrl.u32 %v345, 7
        %v347 = vsub.s32 %v344, %v346
        %v348 = vrot.slane %v340, %v347
        %v350 = vunpack.c.l.s4 1966171168
        %v351 = vunpack.c.0.s8 %v350
        %v352 = vlaneseq
        %v353 = vshrl.u32 %v352, 7
        %v354 = vsub.s32 %v351, %v353
        %v355 = vrot.slane %v348, %v354
        %v357 = vadd.f32 %v328, %v355
        %v358 = vlaneseq
        %vm359 = vcmp.ge.s32.totalorder %v358, 0
        %vm360 = vcmp.lt.s32.totalorder %v358, 256
        %vm361 = vmand %vm359, %vm360
        %362 = vst.msk [vmem:[#allocation2] sm:$0x3] %vm361, %v357
        %v363 = vld [vmem:[#allocation3] sm:$0x3]
        %vm364 = vmor %vm325, %vm337
        %v365 = vsel %vm364, 1, 0
        %v366 = vcvt.s32.f32 %v365
        %v369 = vunpack.c.l.s4 1966171168
        %v370 = vunpack.c.0.s8 %v369
        %v371 = vlaneseq
        %v372 = vshrl.u32 %v371, 7
        %v373 = vsub.s32 %v370, %v372
        %v374 = vrot.slane %v366, %v373
        %v376 = vunpack.c.l.s4 1966171168
        %v377 = vunpack.c.0.s8 %v376
        %v378 = vlaneseq
        %v379 = vshrl.u32 %v378, 7
        %v380 = vsub.s32 %v377, %v379
        %v381 = vrot.slane %v374, %v380
        %v383 = vadd.f32 %v363, %v381
        %384 = vst.msk [vmem:[#allocation3] sm:$0x3] %vm361, %v383
        %p385 = scmp.eq.s32.totalorder %s23, 1
        %p386 = pnand %p385, %p220
        %p387 = pneg %p386
        // Predicated region
        $region33: #{iou_score.1} parent=27 // pred_check
          _
        $region34: #{iou_score.1} parent=27 // pred_check_branch
          %389 = sbr.rel (%p386) target = $region36
        $region35: #{iou_score.1} parent=27 // pred_region
          %v390 = vld [vmem:[#allocation2] sm:$0x3]
          %v392 = vlaneseq
          %v393 = vshrl.u32 %v392, 7
          %v394 = vsub.s32 0, %v393
          %v395 = vrot.slane %v390, %v394
          %v396 = vlaneseq
          %v397 = vshrl.u32 %v396, 7
          %v398 = vsub.s32 1, %v397
          %v399 = vrot.slane %v390, %v398
          %vm402 = vcmask 1040384
          %v403 = vsel %vm402, %v395, 0.0
          %v404 = vsel %vm402, %v399, 0.0
          %v405 = vadd.f32 %v403, %v404
          %406 = vadd.xlane.f32.xlu0 %v405
          %v407 = vpop.xlane.xlu0 %406
          %v408 = vrot.slane %v407, 4
          %v409 = vadd.f32 %v407, %v408
          %v410 = vrot.slane %v409, 2
          %v411 = vadd.f32 %v409, %v410
          %v412 = vrot.slane %v411, 1
          %v413 = vadd.f32 %v411, %v412
          %s414 = vtos %v413
          %v415 = vstv %s414
          %vm416 = vcmask 0
          %417 = vst.msk [vmem:[#allocation6] sm:$0x1] %vm416, %v415
          %v418 = vld [vmem:[#allocation3] sm:$0x3]
          %v420 = vlaneseq
          %v421 = vshrl.u32 %v420, 7
          %v422 = vsub.s32 0, %v421
          %v423 = vrot.slane %v418, %v422
          %v424 = vlaneseq
          %v425 = vshrl.u32 %v424, 7
          %v426 = vsub.s32 1, %v425
          %v427 = vrot.slane %v418, %v426
          %v430 = vsel %vm402, %v423, 0.0
          %v431 = vsel %vm402, %v427, 0.0
          %v432 = vadd.f32 %v430, %v431
          %433 = vadd.xlane.f32.xlu0 %v432
          %v434 = vpop.xlane.xlu0 %433
          %v435 = vrot.slane %v434, 4
          %v436 = vadd.f32 %v434, %v435
          %v437 = vrot.slane %v436, 2
          %v438 = vadd.f32 %v436, %v437
          %v439 = vrot.slane %v438, 1
          %v440 = vadd.f32 %v438, %v439
          %s441 = vtos %v440
          %v442 = vstv %s441
          %443 = vst.msk [vmem:[#allocation8] sm:$0x1] %vm416, %v442
        $region36: #{iou_score.1} parent=27 // pred_fallthru
          _
        // Predicated region
        $region37: #{iou_score.1} parent=27 // pred_check
          %p444 = pneg %p100
        $region38: #{iou_score.1} parent=27 // pred_check_branch
          %446 = sbr.rel (%p444) target = $region40
        $region39: #{iou_score.1} parent=27 // pred_region
          %s448 = ssub.s32 16, 16
          %449 = vsyncadd [#allocation7], %s448
          %s451 = sshll.u32 [#allocation6], 4
          %s452 = int_to_ptr.vmem [resolvable:$true] %s451
          %454 = dma.vmem_to_hbm [thread:$0]  %s452, 16, %s3, [#allocation7]
        $region40: #{iou_score.1} parent=27 // pred_fallthru
          _
        // Predicated region
        $region41: #{iou_score.1} parent=27 // pred_check
          %p455 = pneg %p121
        $region42: #{iou_score.1} parent=27 // pred_check_branch
          %457 = sbr.rel (%p455) target = $region44
        $region43: #{iou_score.1} parent=27 // pred_region
          %s459 = ssub.s32 16, 16
          %460 = vsyncadd [#allocation9], %s459
          %s462 = sshll.u32 [#allocation8], 4
          %s463 = int_to_ptr.vmem [resolvable:$true] %s462
          %465 = dma.vmem_to_hbm [thread:$0]  %s463, 16, %s4, [#allocation9]
        $region44: #{iou_score.1} parent=27 // pred_fallthru
          _
        // Predicated region
        $region45: #{iou_score.1} parent=27 // pred_check
          %p466 = pneg %p100
        $region46: #{iou_score.1} parent=27 // pred_check_branch
          %468 = sbr.rel (%p466) target = $region48
        $region47: #{iou_score.1} parent=27 // pred_region
          %469 = dma.done [#allocation7], 16
        $region48: #{iou_score.1} parent=27 // pred_fallthru
          _
        // Predicated region
        $region49: #{iou_score.1} parent=27 // pred_check
          %p470 = pneg %p121
        $region50: #{iou_score.1} parent=27 // pred_check_branch
          %472 = sbr.rel (%p470) target = $region52
        $region51: #{iou_score.1} parent=27 // pred_region
          %473 = dma.done [#allocation9], 16
        $region52: #{iou_score.1} parent=27 // pred_fallthru
          _
      $region28: #{iou_score.1} parent=5 // pred_fallthru
        _
      %p474 = scmp.le.s32.totalorder 2, %s14
      // Predicated region
      $region53: #{iou_score.1} parent=5 // pred_check
        %p475 = pneg %p474
      $region54: #{iou_score.1} parent=5 // pred_check_branch
        %477 = sbr.rel (%p475) target = $region56
      $region55: #{iou_score.1} parent=5 // pred_region
        %s478 = ssub.s32 %s14, 2
      $region56: #{iou_score.1} parent=5 // pred_fallthru
        _
    $region6: #{iou_score.1} parent=1 // loop_footer
      %s18 = sadd.s32 1, %s14
    $region7: #{iou_score.1} parent=1 // loop_footer_branch
      %13 = sbr.rel target = $region3
    $region8: #{iou_score.1} parent=1 // loop_exit
      _
    %479 = vsyncpa [#allocation7], 1
    %s480 = scalar_lea.sflag [#allocation7], 1
    %481 = vsyncpa %s480, 1
    %482 = vsyncpa [#allocation9], 1

</llo_original>
